<compile_context>
chip_gen: v7x
topology: tpu7x:2x2x1
jax: 0.10.0
libtpu: 0.0.40
codegen_flags: <defaults>
</compile_context>

<pallas_src>
import functools
from typing import NamedTuple

import jax
import jax.numpy as jnp
from jax.experimental import pallas as pl
from jax.experimental.pallas import tpu as pltpu


def _round_up(x, m):
    return (x + m - 1) // m * m


class PackedParams(NamedTuple):
    w1: jax.Array        # (obs_dim, 2*hidden)  fused [actor | critic] layer-1 weight
    b1: jax.Array        # (1, 2*hidden)        fused layer-1 bias (f32)
    w2: jax.Array        # (2*hidden, out_w)    block-diagonal layer-2 weight
    b2: jax.Array        # (1, out_w)           packed layer-2 bias (f32)
    action_dim: int      # static python int


def pack_params(params, compute_dtype=jnp.bfloat16):
    """One-time weight packing (hoisted out of the per-forward path).

    Fuses the two layer-1 weights into one wide matrix and the two layer-2
    weights into one block-diagonal matrix whose output width is padded up to
    a multiple of 128 lanes: columns [0, action_dim) are actor logits, column
    action_dim is the critic value, the rest is zero padding.
    """
    (w1a, b1a, w2a, b2a, w1c, b1c, w2c, b2c) = params
    hidden = w1a.shape[1]
    action_dim = w2a.shape[1]

    w1 = jnp.concatenate([w1a, w1c], axis=1).astype(compute_dtype)   # (obs, 2H)
    b1 = jnp.concatenate([b1a, b1c], axis=1).astype(jnp.float32)     # (1, 2H)

    out_w = _round_up(action_dim + 1, 128)                           # packed width
    w2 = jnp.zeros((2 * hidden, out_w), jnp.float32)
    w2 = w2.at[:hidden, :action_dim].set(w2a)                        # actor block
    w2 = w2.at[hidden:, action_dim].set(w2c[:, 0])                   # critic column
    w2 = w2.astype(compute_dtype)
    b2 = jnp.zeros((1, out_w), jnp.float32)
    b2 = b2.at[:, :action_dim].set(b2a)
    b2 = b2.at[:, action_dim].set(b2c[0, 0])
    return PackedParams(w1, b1, w2, b2, action_dim)


def _policy_kernel(x_ref, w1_ref, b1_ref, w2_ref, b2_ref, probs_ref, value_ref, *,
                   action_dim):
    # Fused layer 1 (actor | critic) on the MXU, f32 accumulation.
    h = jnp.dot(x_ref[...], w1_ref[...], preferred_element_type=jnp.float32)
    h = jnp.maximum(h + b1_ref[...], 0.0)                 # bias + ReLU in f32

    # Fused block-diagonal layer 2 -> packed [logits | value | zero-pad].
    packed = jnp.dot(h.astype(w2_ref.dtype), w2_ref[...],
                     preferred_element_type=jnp.float32) + b2_ref[...]

    logits = packed[:, :action_dim]
    value = packed[:, action_dim:action_dim + 1]

    # sigmoid(x) = 0.5 * (tanh(x/2) + 1): transcendental goes to the EUP slot
    # instead of an f32 exp + divide sequence on the VPU.
    probs_ref[...] = (0.5 * (jnp.tanh(0.5 * logits) + 1.0)).astype(probs_ref.dtype)
    value_ref[...] = value.astype(value_ref.dtype)


def agent_policy_forward(x, packed, *, block_batch=2048):
    """x: (B, obs_dim).  Returns (probs (B, action_dim) f32, value (B, 1) f32).

    `packed` comes from pack_params() (compute once, reuse every call).
    block_batch=2048 keeps the per-tile working set (~10 MiB, dominated by the
    (tm, 2*hidden) f32 hidden activation) inside every generation's scoped
    VMEM (limit raised to 32 MiB below) while amortizing per-grid-step
    pipeline overhead.
    """
    w1, b1, w2, b2, action_dim = packed
    B, obs_dim = x.shape
    two_h = w1.shape[1]
    out_w = w2.shape[1]
    compute_dtype = w1.dtype

    # ---- batch tiling ----
    tm = min(block_batch, _round_up(B, 8))
    # For big batches, make sure there are >= 2 grid steps so the "parallel"
    # batch axis can shard across v7x's 2 TensorCores.
    if _round_up(B, 8) >= 2048 and pl.cdiv(B, tm) < 2:
        tm = _round_up(pl.cdiv(B, 2), 8)
    grid_m = pl.cdiv(B, tm)
    b_pad = grid_m * tm

    xc = x.astype(compute_dtype)
    if b_pad != B:
        # TODO(synk): drop this pad (extra HBM round trip of x) once implicit
        # partial-last-block output masking is verified on the target JAX.
        xc = jnp.pad(xc, ((0, b_pad - B), (0, 0)))

    # Advisory cost estimate so XLA can schedule/overlap around this call.
    flops = 2 * b_pad * obs_dim * two_h + 2 * b_pad * two_h * out_w
    bytes_accessed = (xc.size * xc.dtype.itemsize
                      + w1.size * w1.dtype.itemsize + w2.size * w2.dtype.itemsize
                      + b1.size * 4 + b2.size * 4
                      + b_pad * (action_dim + 1) * 4)
    cost = pl.CostEstimate(flops=flops, transcendentals=b_pad * action_dim,
                           bytes_accessed=bytes_accessed)

    probs, value = pl.pallas_call(
        functools.partial(_policy_kernel, action_dim=action_dim),
        grid=(grid_m,),
        in_specs=[
            pl.BlockSpec((tm, obs_dim), lambda i: (i, 0)),     # x tile over batch
            pl.BlockSpec((obs_dim, two_h), lambda i: (0, 0)),  # fused layer-1 W
            pl.BlockSpec((1, two_h), lambda i: (0, 0)),        # fused layer-1 b
            pl.BlockSpec((two_h, out_w), lambda i: (0, 0)),    # block-diag layer-2 W
            pl.BlockSpec((1, out_w), lambda i: (0, 0)),        # packed layer-2 b
        ],
        out_specs=(
            pl.BlockSpec((tm, action_dim), lambda i: (i, 0)),  # probs (narrow, contiguous)
            pl.BlockSpec((tm, 1), lambda i: (i, 0)),           # value (narrow, contiguous)
        ),
        out_shape=(
            jax.ShapeDtypeStruct((b_pad, action_dim), jnp.float32),
            jax.ShapeDtypeStruct((b_pad, 1), jnp.float32),
        ),
        compiler_params=pltpu.CompilerParams(
            dimension_semantics=("parallel",),
            # v5e's default scoped VMEM (~16 MiB) is too tight at tm=2048;
            # 32 MiB is within the default/physical limits on all generations.
            vmem_limit_bytes=32 * 1024 * 1024,
        ),
        cost_estimate=cost,
        # NOTE: if xprof still shows exposed DMA after these changes, add
        # pipeline_mode=pl.Buffered(3) to the x in_spec / out_specs (~5% win).
    )(xc, w1, b1, w2, b2)

    if b_pad != B:
        probs = probs[:B]
        value = value[:B]
    return probs, value


def init_params(key, obs_dim, action_dim, hidden=256):
    """Deterministic synthetic parameters matching nn.Linear shapes (as x@W+b)."""
    ks = jax.random.split(key, 8)
    scale1 = 1.0 / jnp.sqrt(obs_dim)
    scale2 = 1.0 / jnp.sqrt(hidden)
    w1a = jax.random.uniform(ks[0], (obs_dim, hidden), jnp.float32, -scale1, scale1)
    b1a = jax.random.uniform(ks[1], (1, hidden), jnp.float32, -scale1, scale1)
    w2a = jax.random.uniform(ks[2], (hidden, action_dim), jnp.float32, -scale2, scale2)
    b2a = jax.random.uniform(ks[3], (1, action_dim), jnp.float32, -scale2, scale2)
    w1c = jax.random.uniform(ks[4], (obs_dim, hidden), jnp.float32, -scale1, scale1)
    b1c = jax.random.uniform(ks[5], (1, hidden), jnp.float32, -scale1, scale1)
    w2c = jax.random.uniform(ks[6], (hidden, 1), jnp.float32, -scale2, scale2)
    b2c = jax.random.uniform(ks[7], (1, 1), jnp.float32, -scale2, scale2)
    return (w1a, b1a, w2a, b2a, w1c, b1c, w2c, b2c)


def _reference(x, params):
    (w1a, b1a, w2a, b2a, w1c, b1c, w2c, b2c) = params
    ha = jnp.maximum(x @ w1a + b1a, 0.0)
    probs = jax.nn.sigmoid(ha @ w2a + b2a)
    hc = jnp.maximum(x @ w1c + b1c, 0.0)
    value = hc @ w2c + b2c
    return probs, value


if __name__ == "__main__":
    B, obs_dim, action_dim = 8, 32, 8

    key = jax.random.PRNGKey(0)
    kx, kp = jax.random.split(key)
    x = jax.random.normal(kx, (B, obs_dim), jnp.float32)
    params = init_params(kp, obs_dim, action_dim)
    probs_ref, value_ref = _reference(x, params)

    # ---- f32 compute path: tight check against the pure-JAX reference ----
    packed_f32 = pack_params(params, compute_dtype=jnp.float32)
    probs, value = agent_policy_forward(x, packed_f32)
    jax.block_until_ready((probs, value))
    assert probs.shape == (B, action_dim) and value.shape == (B, 1)
    assert jnp.allclose(probs, probs_ref, atol=1e-4, rtol=1e-4)
    assert jnp.allclose(value, value_ref, atol=1e-5, rtol=1e-5)

    # ---- default bf16 MXU-operand path: looser tolerance ----
    packed_bf16 = pack_params(params)   # compute_dtype=bfloat16 default
    probs_b, value_b = agent_policy_forward(x, packed_bf16)
    jax.block_until_ready((probs_b, value_b))
    assert jnp.allclose(probs_b, probs_ref, atol=5e-2, rtol=5e-2)
    assert jnp.allclose(value_b, value_ref, atol=5e-2, rtol=5e-2)

    # ---- ragged batch (non-multiple of 8) exercises the padding path ----
    x2 = jax.random.normal(kx, (B + 3, obs_dim), jnp.float32)
    p2, v2 = agent_policy_forward(x2, packed_f32)
    jax.block_until_ready((p2, v2))
    p2_ref, v2_ref = _reference(x2, params)
    assert p2.shape == (B + 3, action_dim) and v2.shape == (B + 3, 1)
    assert jnp.allclose(p2, p2_ref, atol=1e-4, rtol=1e-4)
    assert jnp.allclose(v2, v2_ref, atol=1e-5, rtol=1e-5)

    print("KERNEL_OK")
</pallas_src>

<mosaic_0001>
module attributes {stable_mosaic.version = 11 : i64} {
  func.func @_policy_kernel(%arg0: i32, %arg1: memref<8x32xf32, #tpu.memory_space<vmem>>, %arg2: memref<32x512xf32, #tpu.memory_space<vmem>>, %arg3: memref<1x512xf32, #tpu.memory_space<vmem>>, %arg4: memref<512x128xf32, #tpu.memory_space<vmem>>, %arg5: memref<1x128xf32, #tpu.memory_space<vmem>>, %arg6: memref<8x8xf32, #tpu.memory_space<vmem>>, %arg7: memref<8x1xf32, #tpu.memory_space<vmem>>) attributes {dimension_semantics = [#tpu.dimension_semantics<parallel>], iteration_bounds = array<i64: 1>, scalar_prefetch = 0 : i64, scratch_operands = 0 : i64, tpu.core_type = #tpu.core_type<tc>, window_params = [{transform_indices = @transform_0, window_bounds = array<i64: 8, 32>}, {pipeline_mode = #tpu.pipeline_mode<synchronous>, transform_indices = @transform_1, window_bounds = array<i64: 32, 512>}, {pipeline_mode = #tpu.pipeline_mode<synchronous>, transform_indices = @transform_2, window_bounds = array<i64: 1, 512>}, {pipeline_mode = #tpu.pipeline_mode<synchronous>, transform_indices = @transform_3, window_bounds = array<i64: 512, 128>}, {pipeline_mode = #tpu.pipeline_mode<synchronous>, transform_indices = @transform_4, window_bounds = array<i64: 1, 128>}, {transform_indices = @transform_5, window_bounds = array<i64: 8, 8>}, {transform_indices = @transform_6, window_bounds = array<i64: 8, 1>}]} {
    %c0 = arith.constant 0 : index
    %c0_0 = arith.constant 0 : index
    %0 = vector.load %arg1[%c0, %c0_0] : memref<8x32xf32, #tpu.memory_space<vmem>>, vector<8x32xf32>
    %c0_1 = arith.constant 0 : index
    %c0_2 = arith.constant 0 : index
    %1 = vector.load %arg2[%c0_1, %c0_2] : memref<32x512xf32, #tpu.memory_space<vmem>>, vector<32x512xf32>
    %cst = arith.constant dense<0.000000e+00> : vector<8x512xf32>
    %2 = tpu.matmul %0, %1, %cst {dimension_numbers = #tpu.dot_dimension_numbers<[1], [0], [0], [1], [0, 0, 1, 1], [], []>} : vector<8x32xf32>, vector<32x512xf32>, vector<8x512xf32> -> vector<8x512xf32>
    %c0_3 = arith.constant 0 : index
    %c0_4 = arith.constant 0 : index
    %3 = vector.load %arg3[%c0_3, %c0_4] : memref<1x512xf32, #tpu.memory_space<vmem>>, vector<1x512xf32>
    %4 = vector.broadcast %3 : vector<1x512xf32> to vector<8x512xf32>
    %5 = arith.addf %2, %4 : vector<8x512xf32>
    %cst_5 = arith.constant 0.000000e+00 : f32
    %6 = vector.broadcast %cst_5 : f32 to vector<8x512xf32>
    %7 = arith.maximumf %5, %6 : vector<8x512xf32>
    %c0_6 = arith.constant 0 : index
    %c0_7 = arith.constant 0 : index
    %8 = vector.load %arg4[%c0_6, %c0_7] : memref<512x128xf32, #tpu.memory_space<vmem>>, vector<512x128xf32>
    %cst_8 = arith.constant dense<0.000000e+00> : vector<8x128xf32>
    %9 = tpu.matmul %7, %8, %cst_8 {dimension_numbers = #tpu.dot_dimension_numbers<[1], [0], [0], [1], [0, 0, 1, 1], [], []>} : vector<8x512xf32>, vector<512x128xf32>, vector<8x128xf32> -> vector<8x128xf32>
    %c0_9 = arith.constant 0 : index
    %c0_10 = arith.constant 0 : index
    %10 = vector.load %arg5[%c0_9, %c0_10] : memref<1x128xf32, #tpu.memory_space<vmem>>, vector<1x128xf32>
    %11 = vector.broadcast %10 : vector<1x128xf32> to vector<8x128xf32>
    %12 = arith.addf %9, %11 : vector<8x128xf32>
    %13 = vector.extract_strided_slice %12 {offsets = [0, 0], sizes = [8, 8], strides = [1, 1]} : vector<8x128xf32> to vector<8x8xf32>
    %14 = vector.extract_strided_slice %12 {offsets = [0, 8], sizes = [8, 1], strides = [1, 1]} : vector<8x128xf32> to vector<8x1xf32>
    %cst_11 = arith.constant 5.000000e-01 : f32
    %15 = vector.broadcast %cst_11 : f32 to vector<8x8xf32>
    %16 = arith.mulf %15, %13 : vector<8x8xf32>
    %17 = math.tanh %16 : vector<8x8xf32>
    %cst_12 = arith.constant 1.000000e+00 : f32
    %18 = vector.broadcast %cst_12 : f32 to vector<8x8xf32>
    %19 = arith.addf %17, %18 : vector<8x8xf32>
    %cst_13 = arith.constant 5.000000e-01 : f32
    %20 = vector.broadcast %cst_13 : f32 to vector<8x8xf32>
    %21 = arith.mulf %20, %19 : vector<8x8xf32>
    %c0_14 = arith.constant 0 : index
    %c0_15 = arith.constant 0 : index
    %22 = vector.load %arg6[%c0_14, %c0_15] : memref<8x8xf32, #tpu.memory_space<vmem>>, vector<8x8xf32>
    tpu.vector_store %arg6[%c0_14, %c0_15], %21 {strides = array<i32>} : memref<8x8xf32, #tpu.memory_space<vmem>>, vector<8x8xf32>,
    %c0_16 = arith.constant 0 : index
    %c0_17 = arith.constant 0 : index
    %23 = vector.load %arg7[%c0_16, %c0_17] : memref<8x1xf32, #tpu.memory_space<vmem>>, vector<8x1xf32>
    tpu.vector_store %arg7[%c0_16, %c0_17], %14 {strides = array<i32>} : memref<8x1xf32, #tpu.memory_space<vmem>>, vector<8x1xf32>,
    return
  }
  func.func @transform_0(%arg0: i32) -> (i32, i32) {
    %c0_i32 = arith.constant 0 : i32
    %c0_i32_0 = arith.constant 0 : i32
    return %arg0, %c0_i32 : i32, i32
  }
  func.func @transform_1(%arg0: i32) -> (i32, i32) {
    %c0_i32 = arith.constant 0 : i32
    %c0_i32_0 = arith.constant 0 : i32
    %c0_i32_1 = arith.constant 0 : i32
    return %c0_i32, %c0_i32_0 : i32, i32
  }
  func.func @transform_2(%arg0: i32) -> (i32, i32) {
    %c0_i32 = arith.constant 0 : i32
    %c0_i32_0 = arith.constant 0 : i32
    %c0_i32_1 = arith.constant 0 : i32
    return %c0_i32, %c0_i32_0 : i32, i32
  }
  func.func @transform_3(%arg0: i32) -> (i32, i32) {
    %c0_i32 = arith.constant 0 : i32
    %c0_i32_0 = arith.constant 0 : i32
    %c0_i32_1 = arith.constant 0 : i32
    return %c0_i32, %c0_i32_0 : i32, i32
  }
  func.func @transform_4(%arg0: i32) -> (i32, i32) {
    %c0_i32 = arith.constant 0 : i32
    %c0_i32_0 = arith.constant 0 : i32
    %c0_i32_1 = arith.constant 0 : i32
    return %c0_i32, %c0_i32_0 : i32, i32
  }
  func.func @transform_5(%arg0: i32) -> (i32, i32) {
    %c0_i32 = arith.constant 0 : i32
    %c0_i32_0 = arith.constant 0 : i32
    return %arg0, %c0_i32 : i32, i32
  }
  func.func @transform_6(%arg0: i32) -> (i32, i32) {
    %c0_i32 = arith.constant 0 : i32
    %c0_i32_0 = arith.constant 0 : i32
    return %arg0, %c0_i32 : i32, i32
  }
}

</mosaic_0001>

<llo_original>
// kernel: tpu_custom_call.1
$region0: #{tpu_custom_call.1}
  #allocation0 [shape = 'u32[]', space=smem, size = 0x4, offset = 0x4, fixed_abs, tag = 'smem constant byte address 0x4 - core index']
  #allocation1 [shape = 'u32[144,128]{1,0:T(1,128)}', space=vmem, size = 0x12000, scoped, tag = 'internal scratch']
  %s0 = inlined_call_operand.hbm [shape: f32[8,32], index: 0, kind: input, shape index: {}]
  %s1 = inlined_call_operand.hbm [shape: f32[32,512], index: 1, kind: input, shape index: {}]
  %s2 = inlined_call_operand.vmem [shape: f32[1,512], index: 2, kind: input, shape index: {}]
  %s3 = inlined_call_operand.hbm [shape: f32[512,128], index: 3, kind: input, shape index: {}]
  %s4 = inlined_call_operand.vmem [shape: f32[1,128], index: 4, kind: input, shape index: {}]
  %s5 = inlined_call_operand.hbm [shape: f32[8,8], index: 5, kind: output, shape index: {0}]
  %s6 = inlined_call_operand.vmem [shape: f32[8,1], index: 6, kind: output, shape index: {1}]
  %7 = xla_tuple %s5, %s6
  %s8 = sld [smem:[#allocation0]]
  $region50: #{tpu_custom_call.1} parent=0
    _
  %s10 = ssub.s32 1, %s8
  %s11 = scalar_select 0, %s10, %s8
  $region1: #{tpu_custom_call.1} parent=0
    #allocation2 [shape = 'u8[4096]{0}', space=vmem, size = 0x1000, scoped, tag = 'input window, operand 0, single buffered']
    #allocation3 [shape = 's32[1]{0}', space=sflag, size = 0x4, scoped, tag = 'scoped memory for tpu_custom_call.1']
    #allocation4 [shape = 's32[1]{0}', space=sflag, size = 0x4, scoped, tag = 'scoped memory for tpu_custom_call.1']
    #allocation5 [shape = 'u8[65536]{0}', space=vmem, size = 0x10000, scoped, tag = 'input window, operand 1, single buffered']
    #allocation6 [shape = 's32[1]{0}', space=sflag, size = 0x4, scoped, tag = 'scoped memory for tpu_custom_call.1']
    #allocation7 [shape = 'u8[262144]{0}', space=vmem, size = 0x40000, scoped, tag = 'input window, operand 3, single buffered']
    #allocation8 [shape = 'u8[4096]{0}', space=vmem, size = 0x1000, scoped, tag = 'output window, operand 0, single buffered']
    %12 = vsyncpa [#allocation3], 0
    %13 = vsyncpa [#allocation6], 0
    %14 = vsyncpa [#allocation4], 0
    // Predicated region
    $region2: #{tpu_custom_call.1} parent=1 // pred_check
      _
    $region3: #{tpu_custom_call.1} parent=1 // pred_check_branch
      %16 = sbr.rel (0) target = $region5
    $region4: #{tpu_custom_call.1} parent=1 // pred_region
      %s18 = ssub.s32 128, 128
      %19 = vsyncadd [#allocation3], %s18
      %s21 = sshll.u32 [#allocation2], 4
      %s22 = int_to_ptr.vmem [resolvable:$true] %s21
      %24 = dma.hbm_to_vmem [thread:$0]  %s0, 128, %s22, [#allocation3]
    $region5: #{tpu_custom_call.1} parent=1 // pred_fallthru
      _
    // Predicated region
    $region6: #{tpu_custom_call.1} parent=1 // pred_check
      _
    $region7: #{tpu_custom_call.1} parent=1 // pred_check_branch
      %26 = sbr.rel (0) target = $region9
    $region8: #{tpu_custom_call.1} parent=1 // pred_region
      %s28 = ssub.s32 2048, 2048
      %29 = vsyncadd [#allocation6], %s28
      %s30 = sshll.u32 [#allocation5], 4
      %s31 = int_to_ptr.vmem [resolvable:$true] %s30
      %36 = dma.hbm_to_vmem [thread:$0]  %s1, 2048, %s31, [#allocation6], 512, 512, 32
    $region9: #{tpu_custom_call.1} parent=1 // pred_fallthru
      _
    // Predicated region
    $region10: #{tpu_custom_call.1} parent=1 // pred_check
      _
    $region11: #{tpu_custom_call.1} parent=1 // pred_check_branch
      %38 = sbr.rel (0) target = $region13
    $region12: #{tpu_custom_call.1} parent=1 // pred_region
      _
    $region13: #{tpu_custom_call.1} parent=1 // pred_fallthru
      _
    // Predicated region
    $region14: #{tpu_custom_call.1} parent=1 // pred_check
      _
    $region15: #{tpu_custom_call.1} parent=1 // pred_check_branch
      %40 = sbr.rel (0) target = $region17
    $region16: #{tpu_custom_call.1} parent=1 // pred_region
      %s42 = ssub.s32 8192, 8192
      %43 = vsyncadd [#allocation6], %s42
      %s44 = sshll.u32 [#allocation7], 4
      %s45 = int_to_ptr.vmem [resolvable:$true] %s44
      %50 = dma.hbm_to_vmem [thread:$0]  %s3, 8192, %s45, [#allocation6], 128, 128, 8
    $region17: #{tpu_custom_call.1} parent=1 // pred_fallthru
      _
    // Predicated region
    $region18: #{tpu_custom_call.1} parent=1 // pred_check
      _
    $region19: #{tpu_custom_call.1} parent=1 // pred_check_branch
      %52 = sbr.rel (0) target = $region21
    $region20: #{tpu_custom_call.1} parent=1 // pred_region
      _
    $region21: #{tpu_custom_call.1} parent=1 // pred_fallthru
      _
    // Predicated region
    $region22: #{tpu_custom_call.1} parent=1 // pred_check
      _
    $region23: #{tpu_custom_call.1} parent=1 // pred_check_branch
      %54 = sbr.rel (0) target = $region25
    $region24: #{tpu_custom_call.1} parent=1 // pred_region
      %55 = dma.done [#allocation3], 128
    $region25: #{tpu_custom_call.1} parent=1 // pred_fallthru
      _
    // Predicated region
    $region26: #{tpu_custom_call.1} parent=1 // pred_check
      _
    $region27: #{tpu_custom_call.1} parent=1 // pred_check_branch
      %57 = sbr.rel (0) target = $region29
    $region28: #{tpu_custom_call.1} parent=1 // pred_region
      %58 = dma.done [#allocation6], 2048
    $region29: #{tpu_custom_call.1} parent=1 // pred_fallthru
      _
    // Predicated region
    $region30: #{tpu_custom_call.1} parent=1 // pred_check
      _
    $region31: #{tpu_custom_call.1} parent=1 // pred_check_branch
      %60 = sbr.rel (0) target = $region33
    $region32: #{tpu_custom_call.1} parent=1 // pred_region
      %61 = dma.done [#allocation6], 8192
    $region33: #{tpu_custom_call.1} parent=1 // pred_fallthru
      _
    %v62 = vld [vmem:[#allocation2] sm:$0xff]
    %v63 = vld [vmem:[#allocation5] sm:$0xff]
    %v64 = vld [vmem:[#allocation5 + $0x8] sm:$0xff]
    %v65 = vld [vmem:[#allocation5 + $0x10] sm:$0xff]
    %v66 = vld [vmem:[#allocation5 + $0x18] sm:$0xff]
    %v67 = vld [vmem:[#allocation5 + $0x20] sm:$0xff]
    %v68 = vld [vmem:[#allocation5 + $0x28] sm:$0xff]
    %v69 = vld [vmem:[#allocation5 + $0x30] sm:$0xff]
    %v70 = vld [vmem:[#allocation5 + $0x38] sm:$0xff]
    %v71 = vld [vmem:[#allocation5 + $0x40] sm:$0xff]
    %v72 = vld [vmem:[#allocation5 + $0x48] sm:$0xff]
    %v73 = vld [vmem:[#allocation5 + $0x50] sm:$0xff]
    %v74 = vld [vmem:[#allocation5 + $0x58] sm:$0xff]
    %v75 = vld [vmem:[#allocation5 + $0x60] sm:$0xff]
    %v76 = vld [vmem:[#allocation5 + $0x68] sm:$0xff]
    %v77 = vld [vmem:[#allocation5 + $0x70] sm:$0xff]
    %v78 = vld [vmem:[#allocation5 + $0x78] sm:$0xff]
    %v79 = vld [vmem:[%s2] sm:$0xf]
    %v81 = vlaneseq
    %v82 = vshrl.u32 %v81, 7
    %v83 = vsub.s32 0, %v82
    %v84 = vrot.slane %v79, %v83
    %v85 = vlaneseq
    %v86 = vshrl.u32 %v85, 7
    %v87 = vsub.s32 1, %v86
    %v88 = vrot.slane %v79, %v87
    %v89 = vlaneseq
    %v90 = vshrl.u32 %v89, 7
    %v91 = vsub.s32 2, %v90
    %v92 = vrot.slane %v79, %v91
    %v93 = vlaneseq
    %v94 = vshrl.u32 %v93, 7
    %v95 = vsub.s32 3, %v94
    %v96 = vrot.slane %v79, %v95
    %vm101 = vcmask 261120
    %v103 = vsel %vm101, %v62, 0
    %105 = vmatprep.subr.mxu0 %v64
    %106 = vmatpush1.msra.mxu0 %v63
    %107 = vmatprep.subr.mxu0 %v68
    %108 = vmatpush1.msra.mxu0 %v67
    %109 = vmatprep.subr.mxu0 %v72
    %110 = vmatpush1.msra.mxu0 %v71
    %111 = vmatprep.subr.mxu0 %v76
    %112 = vmatpush1.msra.mxu0 %v75
    %113 = vmatprep.subr.mxu0 0.0
    %114 = vmatpush1.msra.mxu0 0.0
    %115 = vmatprep.subr.mxu0 0.0
    %116 = vmatpush1.msra.mxu0 0.0
    %117 = vmatprep.subr.mxu0 0.0
    %118 = vmatpush1.msra.mxu0 0.0
    %119 = vmatprep.subr.mxu0 0.0
    %120 = vmatpush1.msra.mxu0 0.0
    %121 = vmatprep.subr.mxu0 0.0
    %122 = vmatpush1.msra.mxu0 0.0
    %123 = vmatprep.subr.mxu0 0.0
    %124 = vmatpush1.msra.mxu0 0.0
    %125 = vmatprep.subr.mxu0 0.0
    %126 = vmatpush1.msra.mxu0 0.0
    %127 = vmatprep.subr.mxu0 0.0
    %128 = vmatpush1.msra.mxu0 0.0
    %129 = vmatprep.subr.mxu0 0.0
    %130 = vmatpush1.msra.mxu0 0.0
    %131 = vmatprep.subr.mxu0 0.0
    %132 = vmatpush1.msra.mxu0 0.0
    %133 = vmatprep.subr.mxu0 0.0
    %134 = vmatpush1.msra.mxu0 0.0
    %135 = vmatprep.subr.mxu0 0.0
    %136 = vmatpush1.msra.mxu0 0.0
    %137 = vmatprep.subr.mxu0 0.0
    %138 = vmatpush1.msra.mxu0 0.0
    %139 = vmatprep.subr.mxu0 0.0
    %140 = vmatpush1.msra.mxu0 0.0
    %141 = vmatprep.subr.mxu0 0.0
    %142 = vmatpush1.msra.mxu0 0.0
    %143 = vmatprep.subr.mxu0 0.0
    %144 = vmatpush1.msra.mxu0 0.0
    %145 = vmatprep.subr.mxu0 0.0
    %146 = vmatpush1.msra.mxu0 0.0
    %147 = vmatprep.subr.mxu0 0.0
    %148 = vmatpush1.msra.mxu0 0.0
    %149 = vmatprep.subr.mxu0 0.0
    %150 = vmatpush1.msra.mxu0 0.0
    %151 = vmatprep.subr.mxu0 0.0
    %152 = vmatpush1.msra.mxu0 0.0
    %153 = vmatprep.subr.mxu0 0.0
    %154 = vmatpush1.msra.mxu0 0.0
    %155 = vmatprep.subr.mxu0 0.0
    %156 = vmatpush1.msra.mxu0 0.0
    %157 = vmatprep.subr.mxu0 0.0
    %158 = vmatpush1.msra.mxu0 0.0
    %159 = vmatprep.subr.mxu0 0.0
    %160 = vmatpush1.msra.mxu0 0.0
    %161 = vmatprep.subr.mxu0 0.0
    %162 = vmatpush1.msra.mxu0 0.0
    %163 = vmatprep.subr.mxu0 0.0
    %164 = vmatpush1.msra.mxu0 0.0
    %165 = vmatprep.subr.mxu0 0.0
    %166 = vmatpush1.msra.mxu0 0.0
    %167 = vmatprep.subr.mxu0 0.0
    %168 = vmatpush1.msra.mxu0 0.0
    %169 = vmatprep.mubr.f32.mxu0 0.0
    %170 = vmatmul.mubr.f32.gmra.mrb[0].mxu0 %v103
    %v171 = vpop.f32.mrb[0].mxu0
    %v172 = vadd.f32 %v84, %v171
    %v173 = vpop.f32.mrb[0].mxu0
    %v174 = vadd.f32 %v88, %v173
    %175 = vdwg.mxu0
    %176 = vmatprep.subr.mxu0 %v66
    %177 = vmatpush1.msra.mxu0 %v65
    %178 = vmatprep.subr.mxu0 %v70
    %179 = vmatpush1.msra.mxu0 %v69
    %180 = vmatprep.subr.mxu0 %v74
    %181 = vmatpush1.msra.mxu0 %v73
    %182 = vmatprep.subr.mxu0 %v78
    %183 = vmatpush1.msra.mxu0 %v77
    %184 = vmatprep.subr.mxu0 0.0
    %185 = vmatpush1.msra.mxu0 0.0
    %186 = vmatprep.subr.mxu0 0.0
    %187 = vmatpush1.msra.mxu0 0.0
    %188 = vmatprep.subr.mxu0 0.0
    %189 = vmatpush1.msra.mxu0 0.0
    %190 = vmatprep.subr.mxu0 0.0
    %191 = vmatpush1.msra.mxu0 0.0
    %192 = vmatprep.subr.mxu0 0.0
    %193 = vmatpush1.msra.mxu0 0.0
    %194 = vmatprep.subr.mxu0 0.0
    %195 = vmatpush1.msra.mxu0 0.0
    %196 = vmatprep.subr.mxu0 0.0
    %197 = vmatpush1.msra.mxu0 0.0
    %198 = vmatprep.subr.mxu0 0.0
    %199 = vmatpush1.msra.mxu0 0.0
    %200 = vmatprep.subr.mxu0 0.0
    %201 = vmatpush1.msra.mxu0 0.0
    %202 = vmatprep.subr.mxu0 0.0
    %203 = vmatpush1.msra.mxu0 0.0
    %204 = vmatprep.subr.mxu0 0.0
    %205 = vmatpush1.msra.mxu0 0.0
    %206 = vmatprep.subr.mxu0 0.0
    %207 = vmatpush1.msra.mxu0 0.0
    %208 = vmatprep.subr.mxu0 0.0
    %209 = vmatpush1.msra.mxu0 0.0
    %210 = vmatprep.subr.mxu0 0.0
    %211 = vmatpush1.msra.mxu0 0.0
    %212 = vmatprep.subr.mxu0 0.0
    %213 = vmatpush1.msra.mxu0 0.0
    %214 = vmatprep.subr.mxu0 0.0
    %215 = vmatpush1.msra.mxu0 0.0
    %216 = vmatprep.subr.mxu0 0.0
    %217 = vmatpush1.msra.mxu0 0.0
    %218 = vmatprep.subr.mxu0 0.0
    %219 = vmatpush1.msra.mxu0 0.0
    %220 = vmatprep.subr.mxu0 0.0
    %221 = vmatpush1.msra.mxu0 0.0
    %222 = vmatprep.subr.mxu0 0.0
    %223 = vmatpush1.msra.mxu0 0.0
    %224 = vmatprep.subr.mxu0 0.0
    %225 = vmatpush1.msra.mxu0 0.0
    %226 = vmatprep.subr.mxu0 0.0
    %227 = vmatpush1.msra.mxu0 0.0
    %228 = vmatprep.subr.mxu0 0.0
    %229 = vmatpush1.msra.mxu0 0.0
    %230 = vmatprep.subr.mxu0 0.0
    %231 = vmatpush1.msra.mxu0 0.0
    %232 = vmatprep.subr.mxu0 0.0
    %233 = vmatpush1.msra.mxu0 0.0
    %234 = vmatprep.subr.mxu0 0.0
    %235 = vmatpush1.msra.mxu0 0.0
    %236 = vmatprep.subr.mxu0 0.0
    %237 = vmatpush1.msra.mxu0 0.0
    %238 = vmatprep.subr.mxu0 0.0
    %239 = vmatpush1.msra.mxu0 0.0
    %240 = vmatprep.mubr.f32.mxu0 0.0
    %241 = vmatmul.mubr.f32.gmra.mrb[0].mxu0 %v103
    %v242 = vpop.f32.mrb[0].mxu0
    %v243 = vadd.f32 %v92, %v242
    %v244 = vpop.f32.mrb[0].mxu0
    %v245 = vadd.f32 %v96, %v244
    %246 = vdwg.mxu0
    %v247 = vmax.f32 %v172, 0.0
    %v248 = vmax.f32 %v174, 0.0
    %v249 = vmax.f32 %v243, 0.0
    %v250 = vmax.f32 %v245, 0.0
    %v251 = vld [vmem:[#allocation7] sm:$0xff]
    %v252 = vld [vmem:[#allocation7 + $0x8] sm:$0xff]
    %v253 = vld [vmem:[#allocation7 + $0x10] sm:$0xff]
    %v254 = vld [vmem:[#allocation7 + $0x18] sm:$0xff]
    %v255 = vld [vmem:[#allocation7 + $0x20] sm:$0xff]
    %v256 = vld [vmem:[#allocation7 + $0x28] sm:$0xff]
    %v257 = vld [vmem:[#allocation7 + $0x30] sm:$0xff]
    %v258 = vld [vmem:[#allocation7 + $0x38] sm:$0xff]
    %v259 = vld [vmem:[#allocation7 + $0x40] sm:$0xff]
    %v260 = vld [vmem:[#allocation7 + $0x48] sm:$0xff]
    %v261 = vld [vmem:[#allocation7 + $0x50] sm:$0xff]
    %v262 = vld [vmem:[#allocation7 + $0x58] sm:$0xff]
    %v263 = vld [vmem:[#allocation7 + $0x60] sm:$0xff]
    %v264 = vld [vmem:[#allocation7 + $0x68] sm:$0xff]
    %v265 = vld [vmem:[#allocation7 + $0x70] sm:$0xff]
    %v266 = vld [vmem:[#allocation7 + $0x78] sm:$0xff]
    %v267 = vld [vmem:[#allocation7 + $0x80] sm:$0xff]
    %v268 = vld [vmem:[#allocation7 + $0x88] sm:$0xff]
    %v269 = vld [vmem:[#allocation7 + $0x90] sm:$0xff]
    %v270 = vld [vmem:[#allocation7 + $0x98] sm:$0xff]
    %v271 = vld [vmem:[#allocation7 + $0xa0] sm:$0xff]
    %v272 = vld [vmem:[#allocation7 + $0xa8] sm:$0xff]
    %v273 = vld [vmem:[#allocation7 + $0xb0] sm:$0xff]
    %v274 = vld [vmem:[#allocation7 + $0xb8] sm:$0xff]
    %v275 = vld [vmem:[#allocation7 + $0xc0] sm:$0xff]
    %v276 = vld [vmem:[#allocation7 + $0xc8] sm:$0xff]
    %v277 = vld [vmem:[#allocation7 + $0xd0] sm:$0xff]
    %v278 = vld [vmem:[#allocation7 + $0xd8] sm:$0xff]
    %v279 = vld [vmem:[#allocation7 + $0xe0] sm:$0xff]
    %v280 = vld [vmem:[#allocation7 + $0xe8] sm:$0xff]
    %v281 = vld [vmem:[#allocation7 + $0xf0] sm:$0xff]
    %v282 = vld [vmem:[#allocation7 + $0xf8] sm:$0xff]
    %v283 = vld [vmem:[#allocation7 + $0x100] sm:$0xff]
    %v284 = vld [vmem:[#allocation7 + $0x108] sm:$0xff]
    %v285 = vld [vmem:[#allocation7 + $0x110] sm:$0xff]
    %v286 = vld [vmem:[#allocation7 + $0x118] sm:$0xff]
    %v287 = vld [vmem:[#allocation7 + $0x120] sm:$0xff]
    %v288 = vld [vmem:[#allocation7 + $0x128] sm:$0xff]
    %v289 = vld [vmem:[#allocation7 + $0x130] sm:$0xff]
    %v290 = vld [vmem:[#allocation7 + $0x138] sm:$0xff]
    %v291 = vld [vmem:[#allocation7 + $0x140] sm:$0xff]
    %v292 = vld [vmem:[#allocation7 + $0x148] sm:$0xff]
    %v293 = vld [vmem:[#allocation7 + $0x150] sm:$0xff]
    %v294 = vld [vmem:[#allocation7 + $0x158] sm:$0xff]
    %v295 = vld [vmem:[#allocation7 + $0x160] sm:$0xff]
    %v296 = vld [vmem:[#allocation7 + $0x168] sm:$0xff]
    %v297 = vld [vmem:[#allocation7 + $0x170] sm:$0xff]
    %v298 = vld [vmem:[#allocation7 + $0x178] sm:$0xff]
    %v299 = vld [vmem:[#allocation7 + $0x180] sm:$0xff]
    %v300 = vld [vmem:[#allocation7 + $0x188] sm:$0xff]
    %v301 = vld [vmem:[#allocation7 + $0x190] sm:$0xff]
    %v302 = vld [vmem:[#allocation7 + $0x198] sm:$0xff]
    %v303 = vld [vmem:[#allocation7 + $0x1a0] sm:$0xff]
    %v304 = vld [vmem:[#allocation7 + $0x1a8] sm:$0xff]
    %v305 = vld [vmem:[#allocation7 + $0x1b0] sm:$0xff]
    %v306 = vld [vmem:[#allocation7 + $0x1b8] sm:$0xff]
    %v307 = vld [vmem:[#allocation7 + $0x1c0] sm:$0xff]
    %v308 = vld [vmem:[#allocation7 + $0x1c8] sm:$0xff]
    %v309 = vld [vmem:[#allocation7 + $0x1d0] sm:$0xff]
    %v310 = vld [vmem:[#allocation7 + $0x1d8] sm:$0xff]
    %v311 = vld [vmem:[#allocation7 + $0x1e0] sm:$0xff]
    %v312 = vld [vmem:[#allocation7 + $0x1e8] sm:$0xff]
    %v313 = vld [vmem:[#allocation7 + $0x1f0] sm:$0xff]
    %v314 = vld [vmem:[#allocation7 + $0x1f8] sm:$0xff]
    %v315 = vld [vmem:[%s4] sm:$0x1]
    %v317 = vlaneseq
    %v318 = vshrl.u32 %v317, 7
    %v319 = vsub.s32 0, %v318
    %v320 = vrot.slane %v315, %v319
    %322 = vmatprep.subr.mxu0 0.0
    %323 = vmatpush1.msra.mxu0 %v251
    %324 = vmatprep.subr.mxu0 0.0
    %325 = vmatpush1.msra.mxu0 %v252
    %326 = vmatprep.subr.mxu0 0.0
    %327 = vmatpush1.msra.mxu0 %v253
    %328 = vmatprep.subr.mxu0 0.0
    %329 = vmatpush1.msra.mxu0 %v254
    %330 = vmatprep.subr.mxu0 0.0
    %331 = vmatpush1.msra.mxu0 %v255
    %332 = vmatprep.subr.mxu0 0.0
    %333 = vmatpush1.msra.mxu0 %v256
    %334 = vmatprep.subr.mxu0 0.0
    %335 = vmatpush1.msra.mxu0 %v257
    %336 = vmatprep.subr.mxu0 0.0
    %337 = vmatpush1.msra.mxu0 %v258
    %338 = vmatprep.subr.mxu0 0.0
    %339 = vmatpush1.msra.mxu0 %v259
    %340 = vmatprep.subr.mxu0 0.0
    %341 = vmatpush1.msra.mxu0 %v260
    %342 = vmatprep.subr.mxu0 0.0
    %343 = vmatpush1.msra.mxu0 %v261
    %344 = vmatprep.subr.mxu0 0.0
    %345 = vmatpush1.msra.mxu0 %v262
    %346 = vmatprep.subr.mxu0 0.0
    %347 = vmatpush1.msra.mxu0 %v263
    %348 = vmatprep.subr.mxu0 0.0
    %349 = vmatpush1.msra.mxu0 %v264
    %350 = vmatprep.subr.mxu0 0.0
    %351 = vmatpush1.msra.mxu0 %v265
    %352 = vmatprep.subr.mxu0 0.0
    %353 = vmatpush1.msra.mxu0 %v266
    %354 = vmatprep.subr.mxu0 0.0
    %355 = vmatpush1.msra.mxu0 %v267
    %356 = vmatprep.subr.mxu0 0.0
    %357 = vmatpush1.msra.mxu0 %v268
    %358 = vmatprep.subr.mxu0 0.0
    %359 = vmatpush1.msra.mxu0 %v269
    %360 = vmatprep.subr.mxu0 0.0
    %361 = vmatpush1.msra.mxu0 %v270
    %362 = vmatprep.subr.mxu0 0.0
    %363 = vmatpush1.msra.mxu0 %v271
    %364 = vmatprep.subr.mxu0 0.0
    %365 = vmatpush1.msra.mxu0 %v272
    %366 = vmatprep.subr.mxu0 0.0
    %367 = vmatpush1.msra.mxu0 %v273
    %368 = vmatprep.subr.mxu0 0.0
    %369 = vmatpush1.msra.mxu0 %v274
    %370 = vmatprep.subr.mxu0 0.0
    %371 = vmatpush1.msra.mxu0 %v275
    %372 = vmatprep.subr.mxu0 0.0
    %373 = vmatpush1.msra.mxu0 %v276
    %374 = vmatprep.subr.mxu0 0.0
    %375 = vmatpush1.msra.mxu0 %v277
    %376 = vmatprep.subr.mxu0 0.0
    %377 = vmatpush1.msra.mxu0 %v278
    %378 = vmatprep.subr.mxu0 0.0
    %379 = vmatpush1.msra.mxu0 %v279
    %380 = vmatprep.subr.mxu0 0.0
    %381 = vmatpush1.msra.mxu0 %v280
    %382 = vmatprep.subr.mxu0 0.0
    %383 = vmatpush1.msra.mxu0 %v281
    %384 = vmatprep.subr.mxu0 0.0
    %385 = vmatpush1.msra.mxu0 %v282
    %386 = vmatprep.mubr.f32.mxu0 %v248
    %387 = vmatmul.mubr.f32.gmra.mrb[0].mxu0 %v247
    %v388 = vpop.f32.mrb[0].mxu0
    %v389 = vadd.f32 %v320, %v388
    %v390 = vpop.f32.mrb[0].mxu0
    %391 = vdwg.mxu0
    %392 = vmatprep.subr.mxu0 0.0
    %393 = vmatpush1.msra.mxu0 %v283
    %394 = vmatprep.subr.mxu0 0.0
    %395 = vmatpush1.msra.mxu0 %v284
    %396 = vmatprep.subr.mxu0 0.0
    %397 = vmatpush1.msra.mxu0 %v285
    %398 = vmatprep.subr.mxu0 0.0
    %399 = vmatpush1.msra.mxu0 %v286
    %400 = vmatprep.subr.mxu0 0.0
    %401 = vmatpush1.msra.mxu0 %v287
    %402 = vmatprep.subr.mxu0 0.0
    %403 = vmatpush1.msra.mxu0 %v288
    %404 = vmatprep.subr.mxu0 0.0
    %405 = vmatpush1.msra.mxu0 %v289
    %406 = vmatprep.subr.mxu0 0.0
    %407 = vmatpush1.msra.mxu0 %v290
    %408 = vmatprep.subr.mxu0 0.0
    %409 = vmatpush1.msra.mxu0 %v291
    %410 = vmatprep.subr.mxu0 0.0
    %411 = vmatpush1.msra.mxu0 %v292
    %412 = vmatprep.subr.mxu0 0.0
    %413 = vmatpush1.msra.mxu0 %v293
    %414 = vmatprep.subr.mxu0 0.0
    %415 = vmatpush1.msra.mxu0 %v294
    %416 = vmatprep.subr.mxu0 0.0
    %417 = vmatpush1.msra.mxu0 %v295
    %418 = vmatprep.subr.mxu0 0.0
    %419 = vmatpush1.msra.mxu0 %v296
    %420 = vmatprep.subr.mxu0 0.0
    %421 = vmatpush1.msra.mxu0 %v297
    %422 = vmatprep.subr.mxu0 0.0
    %423 = vmatpush1.msra.mxu0 %v298
    %424 = vmatprep.subr.mxu0 0.0
    %425 = vmatpush1.msra.mxu0 %v299
    %426 = vmatprep.subr.mxu0 0.0
    %427 = vmatpush1.msra.mxu0 %v300
    %428 = vmatprep.subr.mxu0 0.0
    %429 = vmatpush1.msra.mxu0 %v301
    %430 = vmatprep.subr.mxu0 0.0
    %431 = vmatpush1.msra.mxu0 %v302
    %432 = vmatprep.subr.mxu0 0.0
    %433 = vmatpush1.msra.mxu0 %v303
    %434 = vmatprep.subr.mxu0 0.0
    %435 = vmatpush1.msra.mxu0 %v304
    %436 = vmatprep.subr.mxu0 0.0
    %437 = vmatpush1.msra.mxu0 %v305
    %438 = vmatprep.subr.mxu0 0.0
    %439 = vmatpush1.msra.mxu0 %v306
    %440 = vmatprep.subr.mxu0 0.0
    %441 = vmatpush1.msra.mxu0 %v307
    %442 = vmatprep.subr.mxu0 0.0
    %443 = vmatpush1.msra.mxu0 %v308
    %444 = vmatprep.subr.mxu0 0.0
    %445 = vmatpush1.msra.mxu0 %v309
    %446 = vmatprep.subr.mxu0 0.0
    %447 = vmatpush1.msra.mxu0 %v310
    %448 = vmatprep.subr.mxu0 0.0
    %449 = vmatpush1.msra.mxu0 %v311
    %450 = vmatprep.subr.mxu0 0.0
    %451 = vmatpush1.msra.mxu0 %v312
    %452 = vmatprep.subr.mxu0 0.0
    %453 = vmatpush1.msra.mxu0 %v313
    %454 = vmatprep.subr.mxu0 0.0
    %455 = vmatpush1.msra.mxu0 %v314
    %456 = vmatprep.mubr.f32.mxu0 %v250
    %457 = vmatmul.mubr.f32.gmra.mrb[0].mxu0 %v249
    %v458 = vpop.f32.mrb[0].mxu0
    %v459 = vadd.f32 %v389, %v458
    %v460 = vpop.f32.mrb[0].mxu0
    %461 = vdwg.mxu0
    %v462 = vmul.f32 %v459, 0.5
    %v463 = vtanh.pop %v462
    %v464 = vadd.f32 %v463, 1.0
    %v465 = vmul.f32 %v464, 0.5
    %vm466 = vcmask 64512
    %467 = vst.msk [vmem:[#allocation8] sm:$0xff] %vm466, %v465
    %469 = vrot.lane.b32.xlu0 %v459, 120
    %v470 = vpop.permute.xlu0 %469
    %vm472 = vcmask 7168
    %473 = vst.msk [vmem:[%s6] sm:$0xff] %vm472, %v470
    // Predicated region
    $region34: #{tpu_custom_call.1} parent=1 // pred_check
      _
    $region35: #{tpu_custom_call.1} parent=1 // pred_check_branch
      %475 = sbr.rel (0) target = $region37
    $region36: #{tpu_custom_call.1} parent=1 // pred_region
      %s477 = ssub.s32 128, 128
      %478 = vsyncadd [#allocation4], %s477
      %s480 = sshll.u32 [#allocation8], 4
      %s481 = int_to_ptr.vmem [resolvable:$true] %s480
      %483 = dma.vmem_to_hbm [thread:$0]  %s481, 128, %s5, [#allocation4]
    $region37: #{tpu_custom_call.1} parent=1 // pred_fallthru
      _
    // Predicated region
    $region38: #{tpu_custom_call.1} parent=1 // pred_check
      _
    $region39: #{tpu_custom_call.1} parent=1 // pred_check_branch
      %485 = sbr.rel (0) target = $region41
    $region40: #{tpu_custom_call.1} parent=1 // pred_region
      _
    $region41: #{tpu_custom_call.1} parent=1 // pred_fallthru
      _
    // Predicated region
    $region42: #{tpu_custom_call.1} parent=1 // pred_check
      _
    $region43: #{tpu_custom_call.1} parent=1 // pred_check_branch
      %487 = sbr.rel (0) target = $region45
    $region44: #{tpu_custom_call.1} parent=1 // pred_region
      %488 = dma.done [#allocation4], 128
    $region45: #{tpu_custom_call.1} parent=1 // pred_fallthru
      _
    // Predicated region
    $region46: #{tpu_custom_call.1} parent=1 // pred_check
      _
    $region47: #{tpu_custom_call.1} parent=1 // pred_check_branch
      %490 = sbr.rel (0) target = $region49
    $region48: #{tpu_custom_call.1} parent=1 // pred_region
      _
    $region49: #{tpu_custom_call.1} parent=1 // pred_fallthru
      _
    %491 = vsyncpa [#allocation3], 1
    %492 = vsyncpa [#allocation6], 1
    %493 = vsyncpa [#allocation4], 1

</llo_original>
